<compile_context>
chip_gen: v7x
topology: tpu7x:2x2x1
jax: 0.10.0
libtpu: 0.0.40
codegen_flags: <defaults>
</compile_context>

<pallas_src>
import functools

import jax
import jax.numpy as jnp
from jax.experimental import pallas as pl
from jax.experimental.pallas import tpu as pltpu


def _self_attention_kernel(x_ref, wt_ref, b_ref, o_ref, *, non_linear):
    """One row-tile of: out = x * softmax(act(x @ W^T + b), axis=-1)."""
    x = x_ref[...]                                            # (tm, A) f32
    # Linear layer on the MXU (wt_ref holds W^T, so x @ W^T == x @ wt).
    s = jnp.dot(x, wt_ref[...], preferred_element_type=jnp.float32)
    s = s + b_ref[...]                                        # broadcast (1, A)

    if non_linear == "relu":
        s = jnp.maximum(s, 0.0)
    else:  # 'tanh' (PyTorch else-branch)
        s = jnp.tanh(s)

    # Numerically-stable softmax over the last (lane) dim.
    s = s - jnp.max(s, axis=-1, keepdims=True)
    e = jnp.exp(s)
    # approx=True -> EUP vrcp slot (otherwise idle next to exp/tanh); error
    # ~2^-14 relative, negligible for a softmax scale.
    p = e * pl.reciprocal(jnp.sum(e, axis=-1, keepdims=True), approx=True)

    o_ref[...] = x * p


def self_attention(x, weight, bias, *, non_linear="tanh", tm=512):
    """x: [..., A] float32.  weight: [A, A].  bias: [A].

    Returns x * softmax(act(fc(x)), axis=-1), same shape/dtype as x.
    """
    orig_shape = x.shape
    A = orig_shape[-1]
    x2 = x.reshape(-1, A)
    N = x2.shape[0]
    assert weight.shape == (A, A) and bias.shape == (A,)

    # Effective row tile: multiple of 8 (sublane), capped by the input size so
    # tiny problems don't pad to a huge tile.  For large N the default tm=512
    # sits near the HBM roofline (256 KiB/buffer, well inside VMEM on all gens)
    # and keeps >=2 grid steps so both v7x TensorCores get work.
    n_pad8 = ((N + 7) // 8) * 8
    tm_eff = max(8, min((tm // 8) * 8, n_pad8))
    n_padded = pl.cdiv(N, tm_eff) * tm_eff
    if n_padded != N:
        # Pad with zeros; padded rows are computed (harmless, finite) and
        # sliced off below.  This removes the "N % tm == 0" restriction.
        x2 = jnp.pad(x2, ((0, n_padded - N), (0, 0)))

    wt = weight.T                      # pre-transpose in glue; kernel does x @ wt
    b2 = bias.reshape(1, A)

    kernel = functools.partial(_self_attention_kernel, non_linear=non_linear)

    out = pl.pallas_call(
        kernel,
        out_shape=jax.ShapeDtypeStruct((n_padded, A), x2.dtype),
        grid_spec=pltpu.PrefetchScalarGridSpec(
            num_scalar_prefetch=0,
            grid=(n_padded // tm_eff,),
            in_specs=[
                pl.BlockSpec((tm_eff, A), lambda i: (i, 0)),   # x row-tile (streamed)
                pl.BlockSpec((A, A), lambda i: (0, 0)),        # W^T (VMEM-resident)
                pl.BlockSpec((1, A), lambda i: (0, 0)),        # bias (VMEM-resident)
            ],
            out_specs=pl.BlockSpec((tm_eff, A), lambda i: (i, 0)),
        ),
        compiler_params=pltpu.CompilerParams(
            dimension_semantics=("parallel",)),
    )(x2, wt, b2)

    if n_padded != N:
        out = out[:N]
    return out.reshape(orig_shape)


def _reference(x, weight, bias, non_linear):
    s = x @ weight.T + bias
    s = jnp.maximum(s, 0.0) if non_linear == "relu" else jnp.tanh(s)
    p = jax.nn.softmax(s, axis=-1)
    return x * p


if __name__ == "__main__":
    ATTENTION_SIZE = 128
    BATCH, SEQ = 2, 8
    NON_LINEAR = "tanh"

    key = jax.random.PRNGKey(0)
    kx, kw, kb = jax.random.split(key, 3)

    # Deterministic parameter init mirroring the module's __init__:
    #   fc.weight ~ U(-0.005, 0.005); fc.bias uses default Linear init U(-1/sqrt(A), 1/sqrt(A)).
    weight = jax.random.uniform(
        kw, (ATTENTION_SIZE, ATTENTION_SIZE), jnp.float32, -0.005, 0.005)
    bound = 1.0 / jnp.sqrt(jnp.float32(ATTENTION_SIZE))
    bias = jax.random.uniform(kb, (ATTENTION_SIZE,), jnp.float32, -bound, bound)

    x = jax.random.normal(kx, (BATCH, SEQ, ATTENTION_SIZE), jnp.float32)

    out = self_attention(x, weight, bias, non_linear=NON_LINEAR)
    out = jax.block_until_ready(out)

    ref = _reference(x, weight, bias, NON_LINEAR)
    assert out.shape == x.shape and out.dtype == x.dtype
    # approx reciprocal in the softmax denominator -> allow ~1e-4 relative slack.
    assert jnp.allclose(out, ref, atol=1e-4, rtol=1e-3), "mismatch vs reference"

    print("KERNEL_OK")
</pallas_src>

<mosaic_0001>
module attributes {stable_mosaic.version = 11 : i64} {
  func.func @_self_attention_kernel(%arg0: i32, %arg1: memref<16x128xf32, #tpu.memory_space<vmem>>, %arg2: memref<128x128xf32, #tpu.memory_space<vmem>>, %arg3: memref<1x128xf32, #tpu.memory_space<vmem>>, %arg4: memref<16x128xf32, #tpu.memory_space<vmem>>) attributes {dimension_semantics = [#tpu.dimension_semantics<parallel>], iteration_bounds = array<i64: 1>, scalar_prefetch = 0 : i64, scratch_operands = 0 : i64, tpu.core_type = #tpu.core_type<tc>, window_params = [{transform_indices = @transform_0, window_bounds = array<i64: 16, 128>}, {pipeline_mode = #tpu.pipeline_mode<synchronous>, transform_indices = @transform_1, window_bounds = array<i64: 128, 128>}, {pipeline_mode = #tpu.pipeline_mode<synchronous>, transform_indices = @transform_2, window_bounds = array<i64: 1, 128>}, {transform_indices = @transform_3, window_bounds = array<i64: 16, 128>}]} {
    %c0 = arith.constant 0 : index
    %c0_0 = arith.constant 0 : index
    %0 = vector.load %arg1[%c0, %c0_0] : memref<16x128xf32, #tpu.memory_space<vmem>>, vector<16x128xf32>
    %c0_1 = arith.constant 0 : index
    %c0_2 = arith.constant 0 : index
    %1 = vector.load %arg2[%c0_1, %c0_2] : memref<128x128xf32, #tpu.memory_space<vmem>>, vector<128x128xf32>
    %cst = arith.constant dense<0.000000e+00> : vector<16x128xf32>
    %2 = tpu.matmul %0, %1, %cst {dimension_numbers = #tpu.dot_dimension_numbers<[1], [0], [0], [1], [0, 0, 1, 1], [], []>} : vector<16x128xf32>, vector<128x128xf32>, vector<16x128xf32> -> vector<16x128xf32>
    %c0_3 = arith.constant 0 : index
    %c0_4 = arith.constant 0 : index
    %3 = vector.load %arg3[%c0_3, %c0_4] : memref<1x128xf32, #tpu.memory_space<vmem>>, vector<1x128xf32>
    %4 = vector.broadcast %3 : vector<1x128xf32> to vector<16x128xf32>
    %5 = arith.addf %2, %4 : vector<16x128xf32>
    %6 = math.tanh %5 : vector<16x128xf32>
    %cst_5 = arith.constant dense<0xFF800000> : vector<16xf32>
    %7 = vector.multi_reduction <maximumf>, %6, %cst_5 [1] : vector<16x128xf32> to vector<16xf32>
    %8 = vector.shape_cast %7 : vector<16xf32> to vector<16x1xf32>
    %9 = vector.broadcast %8 : vector<16x1xf32> to vector<16x128xf32>
    %10 = arith.subf %6, %9 : vector<16x128xf32>
    %11 = math.exp %10 : vector<16x128xf32>
    %cst_6 = arith.constant dense<0.000000e+00> : vector<16xf32>
    %12 = vector.multi_reduction <add>, %11, %cst_6 [1] : vector<16x128xf32> to vector<16xf32>
    %13 = vector.shape_cast %12 : vector<16xf32> to vector<16x1xf32>
    %14 = tpu.reciprocal %13 {approx = true} : vector<16x1xf32> -> vector<16x1xf32>
    %15 = vector.broadcast %14 : vector<16x1xf32> to vector<16x128xf32>
    %16 = arith.mulf %11, %15 : vector<16x128xf32>
    %17 = arith.mulf %0, %16 : vector<16x128xf32>
    %c0_7 = arith.constant 0 : index
    %c0_8 = arith.constant 0 : index
    %18 = vector.load %arg4[%c0_7, %c0_8] : memref<16x128xf32, #tpu.memory_space<vmem>>, vector<16x128xf32>
    tpu.vector_store %arg4[%c0_7, %c0_8], %17 {strides = array<i32>} : memref<16x128xf32, #tpu.memory_space<vmem>>, vector<16x128xf32>,
    return
  }
  func.func @transform_0(%arg0: i32) -> (i32, i32) {
    %c0_i32 = arith.constant 0 : i32
    %c0_i32_0 = arith.constant 0 : i32
    return %arg0, %c0_i32 : i32, i32
  }
  func.func @transform_1(%arg0: i32) -> (i32, i32) {
    %c0_i32 = arith.constant 0 : i32
    %c0_i32_0 = arith.constant 0 : i32
    %c0_i32_1 = arith.constant 0 : i32
    return %c0_i32, %c0_i32_0 : i32, i32
  }
  func.func @transform_2(%arg0: i32) -> (i32, i32) {
    %c0_i32 = arith.constant 0 : i32
    %c0_i32_0 = arith.constant 0 : i32
    %c0_i32_1 = arith.constant 0 : i32
    return %c0_i32, %c0_i32_0 : i32, i32
  }
  func.func @transform_3(%arg0: i32) -> (i32, i32) {
    %c0_i32 = arith.constant 0 : i32
    %c0_i32_0 = arith.constant 0 : i32
    return %arg0, %c0_i32 : i32, i32
  }
}

</mosaic_0001>

<llo_original>
// kernel: tpu_custom_call.1
$region0: #{tpu_custom_call.1}
  #allocation0 [shape = 'u32[]', space=smem, size = 0x4, offset = 0x4, fixed_abs, tag = 'smem constant byte address 0x4 - core index']
  #allocation1 [shape = 'u32[144,128]{1,0:T(1,128)}', space=vmem, size = 0x12000, scoped, tag = 'internal scratch']
  %s0 = inlined_call_operand.hbm [shape: f32[16,128], index: 0, kind: input, shape index: {}]
  %s1 = inlined_call_operand.hbm [shape: f32[128,128], index: 1, kind: input, shape index: {}]
  %s2 = inlined_call_operand.vmem [shape: f32[1,128], index: 2, kind: input, shape index: {}]
  %s3 = inlined_call_operand.hbm [shape: f32[16,128], index: 3, kind: output, shape index: {}]
  %s4 = sld [smem:[#allocation0]]
  $region30: #{tpu_custom_call.1} parent=0
    _
  %s6 = ssub.s32 1, %s4
  %s7 = scalar_select 0, %s6, %s4
  $region1: #{tpu_custom_call.1} parent=0
    #allocation2 [shape = 'u8[8192]{0}', space=vmem, size = 0x2000, scoped, tag = 'input window, operand 0, single buffered']
    #allocation3 [shape = 's32[1]{0}', space=sflag, size = 0x4, scoped, tag = 'scoped memory for tpu_custom_call.1']
    #allocation4 [shape = 's32[1]{0}', space=sflag, size = 0x4, scoped, tag = 'scoped memory for tpu_custom_call.1']
    #allocation5 [shape = 'u8[65536]{0}', space=vmem, size = 0x10000, scoped, tag = 'input window, operand 1, single buffered']
    #allocation6 [shape = 's32[1]{0}', space=sflag, size = 0x4, scoped, tag = 'scoped memory for tpu_custom_call.1']
    #allocation7 [shape = 'u8[8192]{0}', space=vmem, size = 0x2000, scoped, tag = 'output window, operand 0, single buffered']
    %8 = vsyncpa [#allocation3], 0
    %9 = vsyncpa [#allocation6], 0
    %10 = vsyncpa [#allocation4], 0
    // Predicated region
    $region2: #{tpu_custom_call.1} parent=1 // pred_check
      _
    $region3: #{tpu_custom_call.1} parent=1 // pred_check_branch
      %12 = sbr.rel (0) target = $region5
    $region4: #{tpu_custom_call.1} parent=1 // pred_region
      %s14 = ssub.s32 256, 256
      %15 = vsyncadd [#allocation3], %s14
      %s16 = sshll.u32 [#allocation2], 4
      %s17 = int_to_ptr.vmem [resolvable:$true] %s16
      %22 = dma.hbm_to_vmem [thread:$0]  %s0, 256, %s17, [#allocation3], 128, 128, 8
    $region5: #{tpu_custom_call.1} parent=1 // pred_fallthru
      _
    // Predicated region
    $region6: #{tpu_custom_call.1} parent=1 // pred_check
      _
    $region7: #{tpu_custom_call.1} parent=1 // pred_check_branch
      %24 = sbr.rel (0) target = $region9
    $region8: #{tpu_custom_call.1} parent=1 // pred_region
      %s26 = ssub.s32 2048, 2048
      %27 = vsyncadd [#allocation6], %s26
      %s28 = sshll.u32 [#allocation5], 4
      %s29 = int_to_ptr.vmem [resolvable:$true] %s28
      %34 = dma.hbm_to_vmem [thread:$0]  %s1, 2048, %s29, [#allocation6], 128, 128, 8
    $region9: #{tpu_custom_call.1} parent=1 // pred_fallthru
      _
    // Predicated region
    $region10: #{tpu_custom_call.1} parent=1 // pred_check
      _
    $region11: #{tpu_custom_call.1} parent=1 // pred_check_branch
      %36 = sbr.rel (0) target = $region13
    $region12: #{tpu_custom_call.1} parent=1 // pred_region
      _
    $region13: #{tpu_custom_call.1} parent=1 // pred_fallthru
      _
    // Predicated region
    $region14: #{tpu_custom_call.1} parent=1 // pred_check
      _
    $region15: #{tpu_custom_call.1} parent=1 // pred_check_branch
      %38 = sbr.rel (0) target = $region17
    $region16: #{tpu_custom_call.1} parent=1 // pred_region
      %39 = dma.done [#allocation3], 256
    $region17: #{tpu_custom_call.1} parent=1 // pred_fallthru
      _
    // Predicated region
    $region18: #{tpu_custom_call.1} parent=1 // pred_check
      _
    $region19: #{tpu_custom_call.1} parent=1 // pred_check_branch
      %41 = sbr.rel (0) target = $region21
    $region20: #{tpu_custom_call.1} parent=1 // pred_region
      %42 = dma.done [#allocation6], 2048
    $region21: #{tpu_custom_call.1} parent=1 // pred_fallthru
      _
    %v43 = vld [vmem:[#allocation2] sm:$0xff]
    %v44 = vld [vmem:[#allocation2 + $0x8] sm:$0xff]
    %v45 = vld [vmem:[#allocation5] sm:$0xff]
    %v46 = vld [vmem:[#allocation5 + $0x8] sm:$0xff]
    %v47 = vld [vmem:[#allocation5 + $0x10] sm:$0xff]
    %v48 = vld [vmem:[#allocation5 + $0x18] sm:$0xff]
    %v49 = vld [vmem:[#allocation5 + $0x20] sm:$0xff]
    %v50 = vld [vmem:[#allocation5 + $0x28] sm:$0xff]
    %v51 = vld [vmem:[#allocation5 + $0x30] sm:$0xff]
    %v52 = vld [vmem:[#allocation5 + $0x38] sm:$0xff]
    %v53 = vld [vmem:[#allocation5 + $0x40] sm:$0xff]
    %v54 = vld [vmem:[#allocation5 + $0x48] sm:$0xff]
    %v55 = vld [vmem:[#allocation5 + $0x50] sm:$0xff]
    %v56 = vld [vmem:[#allocation5 + $0x58] sm:$0xff]
    %v57 = vld [vmem:[#allocation5 + $0x60] sm:$0xff]
    %v58 = vld [vmem:[#allocation5 + $0x68] sm:$0xff]
    %v59 = vld [vmem:[#allocation5 + $0x70] sm:$0xff]
    %v60 = vld [vmem:[#allocation5 + $0x78] sm:$0xff]
    %v61 = vld [vmem:[%s2] sm:$0x1]
    %v63 = vlaneseq
    %v64 = vshrl.u32 %v63, 7
    %v65 = vsub.s32 0, %v64
    %v66 = vrot.slane %v61, %v65
    %68 = vmatprep.subr.mxu0 0.0
    %69 = vmatpush1.msra.mxu0 %v45
    %70 = vmatprep.subr.mxu0 0.0
    %71 = vmatpush1.msra.mxu0 %v46
    %72 = vmatprep.subr.mxu0 0.0
    %73 = vmatpush1.msra.mxu0 %v47
    %74 = vmatprep.subr.mxu0 0.0
    %75 = vmatpush1.msra.mxu0 %v48
    %76 = vmatprep.subr.mxu0 0.0
    %77 = vmatpush1.msra.mxu0 %v49
    %78 = vmatprep.subr.mxu0 0.0
    %79 = vmatpush1.msra.mxu0 %v50
    %80 = vmatprep.subr.mxu0 0.0
    %81 = vmatpush1.msra.mxu0 %v51
    %82 = vmatprep.subr.mxu0 0.0
    %83 = vmatpush1.msra.mxu0 %v52
    %84 = vmatprep.subr.mxu0 0.0
    %85 = vmatpush1.msra.mxu0 %v53
    %86 = vmatprep.subr.mxu0 0.0
    %87 = vmatpush1.msra.mxu0 %v54
    %88 = vmatprep.subr.mxu0 0.0
    %89 = vmatpush1.msra.mxu0 %v55
    %90 = vmatprep.subr.mxu0 0.0
    %91 = vmatpush1.msra.mxu0 %v56
    %92 = vmatprep.subr.mxu0 0.0
    %93 = vmatpush1.msra.mxu0 %v57
    %94 = vmatprep.subr.mxu0 0.0
    %95 = vmatpush1.msra.mxu0 %v58
    %96 = vmatprep.subr.mxu0 0.0
    %97 = vmatpush1.msra.mxu0 %v59
    %98 = vmatprep.subr.mxu0 0.0
    %99 = vmatpush1.msra.mxu0 %v60
    %100 = vmatprep.subr.mxu0 0.0
    %101 = vmatpush1.msra.mxu0 0.0
    %102 = vmatprep.subr.mxu0 0.0
    %103 = vmatpush1.msra.mxu0 0.0
    %104 = vmatprep.subr.mxu0 0.0
    %105 = vmatpush1.msra.mxu0 0.0
    %106 = vmatprep.subr.mxu0 0.0
    %107 = vmatpush1.msra.mxu0 0.0
    %108 = vmatprep.subr.mxu0 0.0
    %109 = vmatpush1.msra.mxu0 0.0
    %110 = vmatprep.subr.mxu0 0.0
    %111 = vmatpush1.msra.mxu0 0.0
    %112 = vmatprep.subr.mxu0 0.0
    %113 = vmatpush1.msra.mxu0 0.0
    %114 = vmatprep.subr.mxu0 0.0
    %115 = vmatpush1.msra.mxu0 0.0
    %116 = vmatprep.subr.mxu0 0.0
    %117 = vmatpush1.msra.mxu0 0.0
    %118 = vmatprep.subr.mxu0 0.0
    %119 = vmatpush1.msra.mxu0 0.0
    %120 = vmatprep.subr.mxu0 0.0
    %121 = vmatpush1.msra.mxu0 0.0
    %122 = vmatprep.subr.mxu0 0.0
    %123 = vmatpush1.msra.mxu0 0.0
    %124 = vmatprep.subr.mxu0 0.0
    %125 = vmatpush1.msra.mxu0 0.0
    %126 = vmatprep.subr.mxu0 0.0
    %127 = vmatpush1.msra.mxu0 0.0
    %128 = vmatprep.subr.mxu0 0.0
    %129 = vmatpush1.msra.mxu0 0.0
    %130 = vmatprep.subr.mxu0 0.0
    %131 = vmatpush1.msra.mxu0 0.0
    %132 = vmatprep.mubr.f32.mxu0 0.0
    %133 = vmatmul.mubr.f32.gmra.mrb[0].mxu0 %v43
    %v134 = vpop.f32.mrb[0].mxu0
    %v135 = vadd.f32 %v66, %v134
    %v136 = vpop.f32.mrb[0].mxu0
    %137 = vmatprep.mubr.f32.mxu0 0.0
    %138 = vmatmul.mubr.f32.gmra.mrb[0].mxu0 %v44
    %v139 = vpop.f32.mrb[0].mxu0
    %v140 = vadd.f32 %v66, %v139
    %v141 = vpop.f32.mrb[0].mxu0
    %142 = vdwg.mxu0
    %v143 = vtanh.pop %v135
    %v144 = vtanh.pop %v140
    %145 = vmax.xlane.f32.xlu0 %v143
    %v146 = vpop.xlane.xlu0 %145
    %147 = vmax.xlane.f32.xlu0 %v144
    %v148 = vpop.xlane.xlu0 %147
    %v149 = vsub.f32 %v143, %v146
    %v150 = vsub.f32 %v144, %v148
    %v151 = vmul.f32 %v149, 1.442695
    %v152 = vpow.pop %v151
    %v153 = vmul.f32 %v150, 1.442695
    %v154 = vpow.pop %v153
    %155 = vadd.xlane.f32.xlu0 %v152
    %v156 = vpop.xlane.xlu0 %155
    %157 = vadd.xlane.f32.xlu0 %v154
    %v158 = vpop.xlane.xlu0 %157
    %v159 = vrcp.pop %v156
    %v160 = vrcp.pop %v158
    %v161 = vmul.f32 %v152, %v159
    %v162 = vmul.f32 %v154, %v160
    %v163 = vmul.f32 %v43, %v161
    %v164 = vmul.f32 %v44, %v162
    %165 = vst [vmem:[#allocation7] sm:$0xff] %v163
    %166 = vst [vmem:[#allocation7 + $0x8] sm:$0xff] %v164
    // Predicated region
    $region22: #{tpu_custom_call.1} parent=1 // pred_check
      _
    $region23: #{tpu_custom_call.1} parent=1 // pred_check_branch
      %168 = sbr.rel (0) target = $region25
    $region24: #{tpu_custom_call.1} parent=1 // pred_region
      %s170 = ssub.s32 256, 256
      %171 = vsyncadd [#allocation4], %s170
      %s172 = sshll.u32 [#allocation7], 4
      %s173 = int_to_ptr.vmem [resolvable:$true] %s172
      %178 = dma.vmem_to_hbm [thread:$0]  %s173, 256, %s3, [#allocation4], 128, 128, 8
    $region25: #{tpu_custom_call.1} parent=1 // pred_fallthru
      _
    // Predicated region
    $region26: #{tpu_custom_call.1} parent=1 // pred_check
      _
    $region27: #{tpu_custom_call.1} parent=1 // pred_check_branch
      %180 = sbr.rel (0) target = $region29
    $region28: #{tpu_custom_call.1} parent=1 // pred_region
      %181 = dma.done [#allocation4], 256
    $region29: #{tpu_custom_call.1} parent=1 // pred_fallthru
      _
    %182 = vsyncpa [#allocation3], 1
    %183 = vsyncpa [#allocation6], 1
    %184 = vsyncpa [#allocation4], 1

</llo_original>
